<compile_context>
chip_gen: v6e
topology: v6e:2x2x1
jax: 0.10.0
libtpu: 0.0.40
codegen_flags: <defaults>
</compile_context>

<pallas_src>
import jax
import jax.numpy as jnp
from jax.experimental import pallas as pl
from jax.experimental.pallas import tpu as pltpu

EPS = 1e-5  # PyTorch nn.LayerNorm default


def add_norm_kernel(x_ref, w_ref, bvec_ref, g_ref, b_ref, o_ref):
    # x_ref/o_ref: (Bblk, S, D) block of several batch elements
    # w_ref:       (D, D) sub_layer weight   (VMEM-resident, single-buffered)
    # bvec_ref:    (1, D) sub_layer bias     (VMEM-resident, single-buffered)
    # g_ref/b_ref: (S, D) LayerNorm weight / bias (normalized_shape = x.size()[1:])
    x = x_ref[...].astype(jnp.float32)                      # (Bblk, S, D)
    bblk, s, d = x.shape

    # Fused sub_layer as ONE fat matmul: (Bblk*S, D) @ (D, D) on the MXU.
    # The merge/split only touches leading dims (S % 8 == 0 -> layout-preserving).
    w = w_ref[...].astype(jnp.float32)
    sub = jnp.dot(x.reshape(bblk * s, d), w,
                  preferred_element_type=jnp.float32).reshape(bblk, s, d)

    # dropout(p=0.1) is identity in eval mode.
    y = x + sub + bvec_ref[...].astype(jnp.float32)         # (1,D) broadcasts over (Bblk,S,D)

    # Per-batch LayerNorm over (S, D): two-pass centered variance (numerically stable),
    # `centered` reused for the output.  Reductions done one axis at a time (safe lowering).
    inv_n = 1.0 / (s * d)
    mean = jnp.sum(jnp.sum(y, axis=2, keepdims=True), axis=1, keepdims=True) * inv_n
    centered = y - mean                                      # (Bblk, S, D)
    sq = centered * centered
    var = jnp.sum(jnp.sum(sq, axis=2, keepdims=True), axis=1, keepdims=True) * inv_n
    inv = jax.lax.rsqrt(var + EPS)                           # (Bblk, 1, 1)

    gamma = g_ref[...].astype(jnp.float32)                   # (S, D) -> broadcast
    beta = b_ref[...].astype(jnp.float32)
    o_ref[...] = (centered * inv * gamma + beta).astype(o_ref.dtype)


def add_norm(x, W, bvec, gamma, beta):
    """x: (B, S, D); W: (D, D); bvec: (D,); gamma, beta: (S, D).

    Returns LayerNorm(x + (x @ W + bvec)) with normalization over (S, D) per batch element.
    """
    B, S, D = x.shape
    bvec2d = bvec.reshape(1, D)

    xi = x.dtype.itemsize
    oi = xi
    resident_bytes = (D * D * W.dtype.itemsize
                      + D * bvec.dtype.itemsize
                      + S * D * gamma.dtype.itemsize
                      + S * D * beta.dtype.itemsize)

    # Per-generation VMEM budget: physical capacity minus headroom for Mosaic internal
    # scratch / semaphores, capped at 64 MiB (=> ~48 MiB on v7x, 64 MiB on v5e/v6e).
    try:
        vmem_cap = int(pltpu.get_tpu_info().vmem_capacity_bytes)
    except Exception:
        vmem_cap = 128 * 1024 * 1024
    limit_cap = max(min(64 * 1024 * 1024, vmem_cap - 16 * 1024 * 1024), 24 * 1024 * 1024)

    # Choose Bblk: target ~2 MiB per input block (amortizes ~0.35 us/step overhead),
    # bounded by what fits the VMEM budget and by B itself.
    per_batch_in = S * D * xi
    bblk_target = max(1, (2 * 1024 * 1024) // per_batch_in)
    # bytes(Bblk) = 2*Bblk*S*D*xi (dbl-buf in) + 2*Bblk*S*D*oi (dbl-buf out)
    #             + resident (1 buffer each) + ~4*Bblk*S*D*4 (live f32 temporaries)
    per_batch_total = S * D * (2 * xi + 2 * oi + 4 * 4)
    bblk_vmem = max(1, (limit_cap - resident_bytes) // per_batch_total)
    Bblk = int(max(1, min(B, bblk_target, bblk_vmem)))

    # Pad B to a multiple of Bblk (cheap leading-dim pad; padded rows are discarded).
    n_blocks = -(-B // Bblk)
    Bpad = n_blocks * Bblk
    x_p = x if Bpad == B else jnp.pad(x, ((0, Bpad - B), (0, 0), (0, 0)))

    need = (2 * Bblk * S * D * xi + 2 * Bblk * S * D * oi
            + resident_bytes + 4 * Bblk * S * D * 4)
    vmem_limit = int(min(max(need * 5 // 4, 16 * 1024 * 1024), limit_cap))

    def build(single_buffer_residents):
        res_kw = ({"pipeline_mode": pl.Buffered(1)} if single_buffer_residents else {})
        return pl.pallas_call(
            add_norm_kernel,
            out_shape=jax.ShapeDtypeStruct((Bpad, S, D), x.dtype),
            grid_spec=pltpu.PrefetchScalarGridSpec(
                num_scalar_prefetch=0,
                grid=(n_blocks,),
                in_specs=[
                    pl.BlockSpec((Bblk, S, D), lambda i: (i, 0, 0)),           # x (pipelined)
                    pl.BlockSpec((D, D), lambda i: (0, 0), **res_kw),          # W     (resident)
                    pl.BlockSpec((1, D), lambda i: (0, 0), **res_kw),          # bias  (resident)
                    pl.BlockSpec((S, D), lambda i: (0, 0), **res_kw),          # gamma (resident)
                    pl.BlockSpec((S, D), lambda i: (0, 0), **res_kw),          # beta  (resident)
                ],
                out_specs=pl.BlockSpec((Bblk, S, D), lambda i: (i, 0, 0)),
            ),
            compiler_params=pltpu.CompilerParams(
                dimension_semantics=("parallel",),   # >=2 fat steps -> v7x megacore sharding
                vmem_limit_bytes=vmem_limit,
            ),
        )

    try:
        out = build(True)(x_p, W, bvec2d, gamma, beta)
    except Exception:
        # TODO(synk): pl.Buffered(1) not accepted by this JAX build; fall back to the
        # default (double-buffered) pipelining for the resident operands.
        out = build(False)(x_p, W, bvec2d, gamma, beta)

    return out[:B] if Bpad != B else out


def reference(x, W, bvec, gamma, beta):
    sub = jnp.einsum("bsd,de->bse", x, W) + bvec
    y = (x + sub).astype(jnp.float32)
    mean = jnp.mean(y, axis=(1, 2), keepdims=True)
    var = jnp.mean((y - mean) ** 2, axis=(1, 2), keepdims=True)
    return ((y - mean) * jax.lax.rsqrt(var + EPS)) * gamma[None] + beta[None]


if __name__ == "__main__":
    B, S, D = 2, 8, 32  # small shapes consistent with a transformer block input (B, seq, d_model)

    key = jax.random.PRNGKey(0)
    kx, kw, kb = jax.random.split(key, 3)

    x = jax.random.normal(kx, (B, S, D), dtype=jnp.float32)

    # Deterministic "sub_layer": a simple linear projection d_model -> d_model (fused in-kernel).
    W = jax.random.normal(kw, (D, D), dtype=jnp.float32) * (1.0 / jnp.sqrt(D))
    bvec = jax.random.normal(kb, (D,), dtype=jnp.float32) * 0.02

    # Fresh nn.LayerNorm(x.size()[1:]) constructed inside forward -> default init:
    # weight = ones, bias = zeros.
    gamma = jnp.ones((S, D), dtype=jnp.float32)
    beta = jnp.zeros((S, D), dtype=jnp.float32)

    out = add_norm(x, W, bvec, gamma, beta)
    out = jax.block_until_ready(out)

    ref = reference(x, W, bvec, gamma, beta)
    assert out.shape == (B, S, D), "shape mismatch"
    assert jnp.allclose(out, ref, atol=1e-4, rtol=1e-4), "mismatch vs reference"

    print("KERNEL_OK")
</pallas_src>

<mosaic_0001>
module attributes {stable_mosaic.version = 11 : i64} {
  func.func @add_norm_kernel(%arg0: i32, %arg1: memref<2x8x32xf32, #tpu.memory_space<vmem>>, %arg2: memref<32x32xf32, #tpu.memory_space<vmem>>, %arg3: memref<1x32xf32, #tpu.memory_space<vmem>>, %arg4: memref<8x32xf32, #tpu.memory_space<vmem>>, %arg5: memref<8x32xf32, #tpu.memory_space<vmem>>, %arg6: memref<2x8x32xf32, #tpu.memory_space<vmem>>) attributes {dimension_semantics = [#tpu.dimension_semantics<parallel>], iteration_bounds = array<i64: 1>, scalar_prefetch = 0 : i64, scratch_operands = 0 : i64, tpu.core_type = #tpu.core_type<tc>, window_params = [{transform_indices = @transform_0, window_bounds = array<i64: 2, 8, 32>}, {pipeline_mode = #tpu.pipeline_mode<synchronous>, transform_indices = @transform_1, window_bounds = array<i64: 32, 32>}, {pipeline_mode = #tpu.pipeline_mode<synchronous>, transform_indices = @transform_2, window_bounds = array<i64: 1, 32>}, {pipeline_mode = #tpu.pipeline_mode<synchronous>, transform_indices = @transform_3, window_bounds = array<i64: 8, 32>}, {pipeline_mode = #tpu.pipeline_mode<synchronous>, transform_indices = @transform_4, window_bounds = array<i64: 8, 32>}, {transform_indices = @transform_5, window_bounds = array<i64: 2, 8, 32>}]} {
    %c0 = arith.constant 0 : index
    %c0_0 = arith.constant 0 : index
    %c0_1 = arith.constant 0 : index
    %0 = vector.load %arg1[%c0, %c0_0, %c0_1] : memref<2x8x32xf32, #tpu.memory_space<vmem>>, vector<2x8x32xf32>
    %c0_2 = arith.constant 0 : index
    %c0_3 = arith.constant 0 : index
    %1 = vector.load %arg2[%c0_2, %c0_3] : memref<32x32xf32, #tpu.memory_space<vmem>>, vector<32x32xf32>
    %2 = vector.shape_cast %0 : vector<2x8x32xf32> to vector<16x32xf32>
    %cst = arith.constant dense<0.000000e+00> : vector<16x32xf32>
    %3 = tpu.matmul %2, %1, %cst {dimension_numbers = #tpu.dot_dimension_numbers<[1], [0], [0], [1], [0, 0, 1, 1], [], []>} : vector<16x32xf32>, vector<32x32xf32>, vector<16x32xf32> -> vector<16x32xf32>
    %4 = vector.shape_cast %3 : vector<16x32xf32> to vector<2x8x32xf32>
    %5 = arith.addf %0, %4 : vector<2x8x32xf32>
    %c0_4 = arith.constant 0 : index
    %c0_5 = arith.constant 0 : index
    %6 = vector.load %arg3[%c0_4, %c0_5] : memref<1x32xf32, #tpu.memory_space<vmem>>, vector<1x32xf32>
    %7 = vector.shape_cast %6 : vector<1x32xf32> to vector<1x1x32xf32>
    %8 = vector.broadcast %7 : vector<1x1x32xf32> to vector<2x8x32xf32>
    %9 = arith.addf %5, %8 : vector<2x8x32xf32>
    %cst_6 = arith.constant dense<0.000000e+00> : vector<2x8xf32>
    %10 = vector.multi_reduction <add>, %9, %cst_6 [2] : vector<2x8x32xf32> to vector<2x8xf32>
    %11 = vector.shape_cast %10 : vector<2x8xf32> to vector<2x8x1xf32>
    %cst_7 = arith.constant dense<0.000000e+00> : vector<2x1xf32>
    %12 = vector.multi_reduction <add>, %11, %cst_7 [1] : vector<2x8x1xf32> to vector<2x1xf32>
    %13 = vector.shape_cast %12 : vector<2x1xf32> to vector<2x1x1xf32>
    %cst_8 = arith.constant 3.906250e-03 : f32
    %14 = vector.broadcast %cst_8 : f32 to vector<2x1x1xf32>
    %15 = arith.mulf %13, %14 : vector<2x1x1xf32>
    %16 = vector.broadcast %15 : vector<2x1x1xf32> to vector<2x8x32xf32>
    %17 = arith.subf %9, %16 : vector<2x8x32xf32>
    %18 = arith.mulf %17, %17 : vector<2x8x32xf32>
    %cst_9 = arith.constant dense<0.000000e+00> : vector<2x8xf32>
    %19 = vector.multi_reduction <add>, %18, %cst_9 [2] : vector<2x8x32xf32> to vector<2x8xf32>
    %20 = vector.shape_cast %19 : vector<2x8xf32> to vector<2x8x1xf32>
    %cst_10 = arith.constant dense<0.000000e+00> : vector<2x1xf32>
    %21 = vector.multi_reduction <add>, %20, %cst_10 [1] : vector<2x8x1xf32> to vector<2x1xf32>
    %22 = vector.shape_cast %21 : vector<2x1xf32> to vector<2x1x1xf32>
    %cst_11 = arith.constant 3.906250e-03 : f32
    %23 = vector.broadcast %cst_11 : f32 to vector<2x1x1xf32>
    %24 = arith.mulf %22, %23 : vector<2x1x1xf32>
    %cst_12 = arith.constant 9.99999974E-6 : f32
    %25 = vector.broadcast %cst_12 : f32 to vector<2x1x1xf32>
    %26 = arith.addf %24, %25 : vector<2x1x1xf32>
    %27 = math.rsqrt %26 : vector<2x1x1xf32>
    %c0_13 = arith.constant 0 : index
    %c0_14 = arith.constant 0 : index
    %28 = vector.load %arg4[%c0_13, %c0_14] : memref<8x32xf32, #tpu.memory_space<vmem>>, vector<8x32xf32>
    %c0_15 = arith.constant 0 : index
    %c0_16 = arith.constant 0 : index
    %29 = vector.load %arg5[%c0_15, %c0_16] : memref<8x32xf32, #tpu.memory_space<vmem>>, vector<8x32xf32>
    %30 = vector.broadcast %27 : vector<2x1x1xf32> to vector<2x8x32xf32>
    %31 = arith.mulf %17, %30 : vector<2x8x32xf32>
    %32 = vector.shape_cast %28 : vector<8x32xf32> to vector<1x8x32xf32>
    %33 = vector.broadcast %32 : vector<1x8x32xf32> to vector<2x8x32xf32>
    %34 = arith.mulf %31, %33 : vector<2x8x32xf32>
    %35 = vector.shape_cast %29 : vector<8x32xf32> to vector<1x8x32xf32>
    %36 = vector.broadcast %35 : vector<1x8x32xf32> to vector<2x8x32xf32>
    %37 = arith.addf %34, %36 : vector<2x8x32xf32>
    %c0_17 = arith.constant 0 : index
    %c0_18 = arith.constant 0 : index
    %c0_19 = arith.constant 0 : index
    %38 = vector.load %arg6[%c0_17, %c0_18, %c0_19] : memref<2x8x32xf32, #tpu.memory_space<vmem>>, vector<2x8x32xf32>
    tpu.vector_store %arg6[%c0_17, %c0_18, %c0_19], %37 {strides = array<i32>} : memref<2x8x32xf32, #tpu.memory_space<vmem>>, vector<2x8x32xf32>,
    return
  }
  func.func @transform_0(%arg0: i32) -> (i32, i32, i32) {
    %c0_i32 = arith.constant 0 : i32
    %c0_i32_0 = arith.constant 0 : i32
    %c0_i32_1 = arith.constant 0 : i32
    return %arg0, %c0_i32, %c0_i32_0 : i32, i32, i32
  }
  func.func @transform_1(%arg0: i32) -> (i32, i32) {
    %c0_i32 = arith.constant 0 : i32
    %c0_i32_0 = arith.constant 0 : i32
    %c0_i32_1 = arith.constant 0 : i32
    return %c0_i32, %c0_i32_0 : i32, i32
  }
  func.func @transform_2(%arg0: i32) -> (i32, i32) {
    %c0_i32 = arith.constant 0 : i32
    %c0_i32_0 = arith.constant 0 : i32
    %c0_i32_1 = arith.constant 0 : i32
    return %c0_i32, %c0_i32_0 : i32, i32
  }
  func.func @transform_3(%arg0: i32) -> (i32, i32) {
    %c0_i32 = arith.constant 0 : i32
    %c0_i32_0 = arith.constant 0 : i32
    %c0_i32_1 = arith.constant 0 : i32
    return %c0_i32, %c0_i32_0 : i32, i32
  }
  func.func @transform_4(%arg0: i32) -> (i32, i32) {
    %c0_i32 = arith.constant 0 : i32
    %c0_i32_0 = arith.constant 0 : i32
    %c0_i32_1 = arith.constant 0 : i32
    return %c0_i32, %c0_i32_0 : i32, i32
  }
  func.func @transform_5(%arg0: i32) -> (i32, i32, i32) {
    %c0_i32 = arith.constant 0 : i32
    %c0_i32_0 = arith.constant 0 : i32
    %c0_i32_1 = arith.constant 0 : i32
    return %arg0, %c0_i32, %c0_i32_0 : i32, i32, i32
  }
}

module attributes {stable_mosaic.version = 11 : i64} {
  func.func @add_norm_kernel(%arg0: i32, %arg1: memref<2x8x32xf32, #tpu.memory_space<vmem>>, %arg2: memref<32x32xf32, #tpu.memory_space<vmem>>, %arg3: memref<1x32xf32, #tpu.memory_space<vmem>>, %arg4: memref<8x32xf32, #tpu.memory_space<vmem>>, %arg5: memref<8x32xf32, #tpu.memory_space<vmem>>, %arg6: memref<2x8x32xf32, #tpu.memory_space<vmem>>) attributes {dimension_semantics = [#tpu.dimension_semantics<parallel>], iteration_bounds = array<i64: 1>, scalar_prefetch = 0 : i64, scratch_operands = 0 : i64, tpu.core_type = #tpu.core_type<tc>, window_params = [{transform_indices = @transform_0, window_bounds = array<i64: 2, 8, 32>}, {pipeline_mode = #tpu.pipeline_mode<synchronous>, transform_indices = @transform_1, window_bounds = array<i64: 32, 32>}, {pipeline_mode = #tpu.pipeline_mode<synchronous>, transform_indices = @transform_2, window_bounds = array<i64: 1, 32>}, {pipeline_mode = #tpu.pipeline_mode<synchronous>, transform_indices = @transform_3, window_bounds = array<i64: 8, 32>}, {pipeline_mode = #tpu.pipeline_mode<synchronous>, transform_indices = @transform_4, window_bounds = array<i64: 8, 32>}, {transform_indices = @transform_5, window_bounds = array<i64: 2, 8, 32>}]} {
    %c0 = arith.constant 0 : index
    %c0_0 = arith.constant 0 : index
    %c0_1 = arith.constant 0 : index
    %0 = vector.load %arg1[%c0, %c0_0, %c0_1] : memref<2x8x32xf32, #tpu.memory_space<vmem>>, vector<2x8x32xf32>
    %c0_2 = arith.constant 0 : index
    %c0_3 = arith.constant 0 : index
    %1 = vector.load %arg2[%c0_2, %c0_3] : memref<32x32xf32, #tpu.memory_space<vmem>>, vector<32x32xf32>
    %2 = vector.shape_cast %0 : vector<2x8x32xf32> to vector<16x32xf32>
    %cst = arith.constant dense<0.000000e+00> : vector<16x32xf32>
    %3 = tpu.matmul %2, %1, %cst {dimension_numbers = #tpu.dot_dimension_numbers<[1], [0], [0], [1], [0, 0, 1, 1], [], []>} : vector<16x32xf32>, vector<32x32xf32>, vector<16x32xf32> -> vector<16x32xf32>
    %4 = vector.shape_cast %3 : vector<16x32xf32> to vector<2x8x32xf32>
    %5 = arith.addf %0, %4 : vector<2x8x32xf32>
    %c0_4 = arith.constant 0 : index
    %c0_5 = arith.constant 0 : index
    %6 = vector.load %arg3[%c0_4, %c0_5] : memref<1x32xf32, #tpu.memory_space<vmem>>, vector<1x32xf32>
    %7 = vector.shape_cast %6 : vector<1x32xf32> to vector<1x1x32xf32>
    %8 = vector.broadcast %7 : vector<1x1x32xf32> to vector<2x8x32xf32>
    %9 = arith.addf %5, %8 : vector<2x8x32xf32>
    %cst_6 = arith.constant dense<0.000000e+00> : vector<2x8xf32>
    %10 = vector.multi_reduction <add>, %9, %cst_6 [2] : vector<2x8x32xf32> to vector<2x8xf32>
    %11 = vector.shape_cast %10 : vector<2x8xf32> to vector<2x8x1xf32>
    %cst_7 = arith.constant dense<0.000000e+00> : vector<2x1xf32>
    %12 = vector.multi_reduction <add>, %11, %cst_7 [1] : vector<2x8x1xf32> to vector<2x1xf32>
    %13 = vector.shape_cast %12 : vector<2x1xf32> to vector<2x1x1xf32>
    %cst_8 = arith.constant 3.906250e-03 : f32
    %14 = vector.broadcast %cst_8 : f32 to vector<2x1x1xf32>
    %15 = arith.mulf %13, %14 : vector<2x1x1xf32>
    %16 = vector.broadcast %15 : vector<2x1x1xf32> to vector<2x8x32xf32>
    %17 = arith.subf %9, %16 : vector<2x8x32xf32>
    %18 = arith.mulf %17, %17 : vector<2x8x32xf32>
    %cst_9 = arith.constant dense<0.000000e+00> : vector<2x8xf32>
    %19 = vector.multi_reduction <add>, %18, %cst_9 [2] : vector<2x8x32xf32> to vector<2x8xf32>
    %20 = vector.shape_cast %19 : vector<2x8xf32> to vector<2x8x1xf32>
    %cst_10 = arith.constant dense<0.000000e+00> : vector<2x1xf32>
    %21 = vector.multi_reduction <add>, %20, %cst_10 [1] : vector<2x8x1xf32> to vector<2x1xf32>
    %22 = vector.shape_cast %21 : vector<2x1xf32> to vector<2x1x1xf32>
    %cst_11 = arith.constant 3.906250e-03 : f32
    %23 = vector.broadcast %cst_11 : f32 to vector<2x1x1xf32>
    %24 = arith.mulf %22, %23 : vector<2x1x1xf32>
    %cst_12 = arith.constant 9.99999974E-6 : f32
    %25 = vector.broadcast %cst_12 : f32 to vector<2x1x1xf32>
    %26 = arith.addf %24, %25 : vector<2x1x1xf32>
    %27 = math.rsqrt %26 : vector<2x1x1xf32>
    %c0_13 = arith.constant 0 : index
    %c0_14 = arith.constant 0 : index
    %28 = vector.load %arg4[%c0_13, %c0_14] : memref<8x32xf32, #tpu.memory_space<vmem>>, vector<8x32xf32>
    %c0_15 = arith.constant 0 : index
    %c0_16 = arith.constant 0 : index
    %29 = vector.load %arg5[%c0_15, %c0_16] : memref<8x32xf32, #tpu.memory_space<vmem>>, vector<8x32xf32>
    %30 = vector.broadcast %27 : vector<2x1x1xf32> to vector<2x8x32xf32>
    %31 = arith.mulf %17, %30 : vector<2x8x32xf32>
    %32 = vector.shape_cast %28 : vector<8x32xf32> to vector<1x8x32xf32>
    %33 = vector.broadcast %32 : vector<1x8x32xf32> to vector<2x8x32xf32>
    %34 = arith.mulf %31, %33 : vector<2x8x32xf32>
    %35 = vector.shape_cast %29 : vector<8x32xf32> to vector<1x8x32xf32>
    %36 = vector.broadcast %35 : vector<1x8x32xf32> to vector<2x8x32xf32>
    %37 = arith.addf %34, %36 : vector<2x8x32xf32>
    %c0_17 = arith.constant 0 : index
    %c0_18 = arith.constant 0 : index
    %c0_19 = arith.constant 0 : index
    %38 = vector.load %arg6[%c0_17, %c0_18, %c0_19] : memref<2x8x32xf32, #tpu.memory_space<vmem>>, vector<2x8x32xf32>
    tpu.vector_store %arg6[%c0_17, %c0_18, %c0_19], %37 {strides = array<i32>} : memref<2x8x32xf32, #tpu.memory_space<vmem>>, vector<2x8x32xf32>,
    return
  }
  func.func @transform_0(%arg0: i32) -> (i32, i32, i32) {
    %c0_i32 = arith.constant 0 : i32
    %c0_i32_0 = arith.constant 0 : i32
    %c0_i32_1 = arith.constant 0 : i32
    return %arg0, %c0_i32, %c0_i32_0 : i32, i32, i32
  }
  func.func @transform_1(%arg0: i32) -> (i32, i32) {
    %c0_i32 = arith.constant 0 : i32
    %c0_i32_0 = arith.constant 0 : i32
    %c0_i32_1 = arith.constant 0 : i32
    return %c0_i32, %c0_i32_0 : i32, i32
  }
  func.func @transform_2(%arg0: i32) -> (i32, i32) {
    %c0_i32 = arith.constant 0 : i32
    %c0_i32_0 = arith.constant 0 : i32
    %c0_i32_1 = arith.constant 0 : i32
    return %c0_i32, %c0_i32_0 : i32, i32
  }
  func.func @transform_3(%arg0: i32) -> (i32, i32) {
    %c0_i32 = arith.constant 0 : i32
    %c0_i32_0 = arith.constant 0 : i32
    %c0_i32_1 = arith.constant 0 : i32
    return %c0_i32, %c0_i32_0 : i32, i32
  }
  func.func @transform_4(%arg0: i32) -> (i32, i32) {
    %c0_i32 = arith.constant 0 : i32
    %c0_i32_0 = arith.constant 0 : i32
    %c0_i32_1 = arith.constant 0 : i32
    return %c0_i32, %c0_i32_0 : i32, i32
  }
  func.func @transform_5(%arg0: i32) -> (i32, i32, i32) {
    %c0_i32 = arith.constant 0 : i32
    %c0_i32_0 = arith.constant 0 : i32
    %c0_i32_1 = arith.constant 0 : i32
    return %arg0, %c0_i32, %c0_i32_0 : i32, i32, i32
  }
}

</mosaic_0001>

<llo_original>
// kernel: tpu_custom_call.1
$region0: #{tpu_custom_call.1}
  #allocation0 [shape = 'u32[]', space=smem, size = 0x4, offset = 0x4, fixed_abs, tag = 'smem constant byte address 0x4 - core index']
  #allocation1 [shape = 'u32[144,128]{1,0:T(1,128)}', space=vmem, size = 0x12000, scoped, tag = 'internal scratch']
  %s0 = inlined_call_operand.hbm [shape: f32[2,8,32], index: 0, kind: input, shape index: {}]
  %s1 = inlined_call_operand.hbm [shape: f32[32,32], index: 1, kind: input, shape index: {}]
  %s2 = inlined_call_operand.vmem [shape: f32[1,32], index: 2, kind: input, shape index: {}]
  %s3 = inlined_call_operand.hbm [shape: f32[8,32], index: 3, kind: input, shape index: {}]
  %s4 = inlined_call_operand.hbm [shape: f32[8,32], index: 4, kind: input, shape index: {}]
  %s5 = inlined_call_operand.hbm [shape: f32[2,8,32], index: 5, kind: output, shape index: {}]
  %s6 = sld [smem:[#allocation0]]
  $region46: #{tpu_custom_call.1} parent=0
    _
  %s8 = ssub.s32 1, %s6
  %s9 = scalar_select 0, %s8, %s6
  $region1: #{tpu_custom_call.1} parent=0
    #allocation2 [shape = 'u8[8192]{0}', space=vmem, size = 0x2000, scoped, tag = 'input window, operand 0, single buffered']
    #allocation3 [shape = 's32[1]{0}', space=sflag, size = 0x4, scoped, tag = 'scoped memory for tpu_custom_call.1']
    #allocation4 [shape = 's32[1]{0}', space=sflag, size = 0x4, scoped, tag = 'scoped memory for tpu_custom_call.1']
    #allocation5 [shape = 'u8[16384]{0}', space=vmem, size = 0x4000, scoped, tag = 'input window, operand 1, single buffered']
    #allocation6 [shape = 's32[1]{0}', space=sflag, size = 0x4, scoped, tag = 'scoped memory for tpu_custom_call.1']
    #allocation7 [shape = 'u8[4096]{0}', space=vmem, size = 0x1000, scoped, tag = 'input window, operand 3, single buffered']
    #allocation8 [shape = 'u8[4096]{0}', space=vmem, size = 0x1000, scoped, tag = 'input window, operand 4, single buffered']
    #allocation9 [shape = 's32[1]{0}', space=sflag, size = 0x4, scoped, tag = 'scoped memory for tpu_custom_call.1']
    #allocation10 [shape = 'u8[8192]{0}', space=vmem, size = 0x2000, scoped, tag = 'output window, operand 0, single buffered']
    %10 = vsyncpa [#allocation3], 0
    %11 = vsyncpa [#allocation6], 0
    %12 = vsyncpa [#allocation9], 0
    %13 = vsyncpa [#allocation4], 0
    // Predicated region
    $region2: #{tpu_custom_call.1} parent=1 // pred_check
      _
    $region3: #{tpu_custom_call.1} parent=1 // pred_check_branch
      %15 = sbr.rel (0) target = $region5
    $region4: #{tpu_custom_call.1} parent=1 // pred_region
      %s17 = ssub.s32 256, 256
      %18 = vsyncadd [#allocation3], %s17
      %s19 = sshll.u32 [#allocation2], 4
      %s20 = int_to_ptr.vmem [resolvable:$true] %s19
      %25 = dma.hbm_to_vmem [thread:$0]  %s0, 256, %s20, [#allocation3], 128, 128, 8
    $region5: #{tpu_custom_call.1} parent=1 // pred_fallthru
      _
    // Predicated region
    $region6: #{tpu_custom_call.1} parent=1 // pred_check
      _
    $region7: #{tpu_custom_call.1} parent=1 // pred_check_branch
      %27 = sbr.rel (0) target = $region9
    $region8: #{tpu_custom_call.1} parent=1 // pred_region
      %s29 = ssub.s32 512, 512
      %30 = vsyncadd [#allocation6], %s29
      %s31 = sshll.u32 [#allocation5], 4
      %s32 = int_to_ptr.vmem [resolvable:$true] %s31
      %37 = dma.hbm_to_vmem [thread:$0]  %s1, 512, %s32, [#allocation6], 128, 128, 8
    $region9: #{tpu_custom_call.1} parent=1 // pred_fallthru
      _
    // Predicated region
    $region10: #{tpu_custom_call.1} parent=1 // pred_check
      _
    $region11: #{tpu_custom_call.1} parent=1 // pred_check_branch
      %39 = sbr.rel (0) target = $region13
    $region12: #{tpu_custom_call.1} parent=1 // pred_region
      _
    $region13: #{tpu_custom_call.1} parent=1 // pred_fallthru
      _
    // Predicated region
    $region14: #{tpu_custom_call.1} parent=1 // pred_check
      _
    $region15: #{tpu_custom_call.1} parent=1 // pred_check_branch
      %41 = sbr.rel (0) target = $region17
    $region16: #{tpu_custom_call.1} parent=1 // pred_region
      %s43 = ssub.s32 128, 128
      %44 = vsyncadd [#allocation6], %s43
      %s46 = sshll.u32 [#allocation7], 4
      %s47 = int_to_ptr.vmem [resolvable:$true] %s46
      %49 = dma.hbm_to_vmem [thread:$0]  %s3, 128, %s47, [#allocation6]
    $region17: #{tpu_custom_call.1} parent=1 // pred_fallthru
      _
    // Predicated region
    $region18: #{tpu_custom_call.1} parent=1 // pred_check
      _
    $region19: #{tpu_custom_call.1} parent=1 // pred_check_branch
      %51 = sbr.rel (0) target = $region21
    $region20: #{tpu_custom_call.1} parent=1 // pred_region
      %s53 = ssub.s32 128, 128
      %54 = vsyncadd [#allocation9], %s53
      %s56 = sshll.u32 [#allocation8], 4
      %s57 = int_to_ptr.vmem [resolvable:$true] %s56
      %59 = dma.hbm_to_vmem [thread:$0]  %s4, 128, %s57, [#allocation9]
    $region21: #{tpu_custom_call.1} parent=1 // pred_fallthru
      _
    // Predicated region
    $region22: #{tpu_custom_call.1} parent=1 // pred_check
      _
    $region23: #{tpu_custom_call.1} parent=1 // pred_check_branch
      %61 = sbr.rel (0) target = $region25
    $region24: #{tpu_custom_call.1} parent=1 // pred_region
      %62 = dma.done [#allocation3], 256
    $region25: #{tpu_custom_call.1} parent=1 // pred_fallthru
      _
    // Predicated region
    $region26: #{tpu_custom_call.1} parent=1 // pred_check
      _
    $region27: #{tpu_custom_call.1} parent=1 // pred_check_branch
      %64 = sbr.rel (0) target = $region29
    $region28: #{tpu_custom_call.1} parent=1 // pred_region
      %65 = dma.done [#allocation6], 512
    $region29: #{tpu_custom_call.1} parent=1 // pred_fallthru
      _
    // Predicated region
    $region30: #{tpu_custom_call.1} parent=1 // pred_check
      _
    $region31: #{tpu_custom_call.1} parent=1 // pred_check_branch
      %67 = sbr.rel (0) target = $region33
    $region32: #{tpu_custom_call.1} parent=1 // pred_region
      %68 = dma.done [#allocation6], 128
    $region33: #{tpu_custom_call.1} parent=1 // pred_fallthru
      _
    // Predicated region
    $region34: #{tpu_custom_call.1} parent=1 // pred_check
      _
    $region35: #{tpu_custom_call.1} parent=1 // pred_check_branch
      %70 = sbr.rel (0) target = $region37
    $region36: #{tpu_custom_call.1} parent=1 // pred_region
      %71 = dma.done [#allocation9], 128
    $region37: #{tpu_custom_call.1} parent=1 // pred_fallthru
      _
    %v72 = vld [vmem:[#allocation2] sm:$0xff]
    %v73 = vld [vmem:[#allocation2 + $0x8] sm:$0xff]
    %v74 = vld [vmem:[#allocation5] sm:$0xff]
    %v75 = vld [vmem:[#allocation5 + $0x8] sm:$0xff]
    %v76 = vld [vmem:[#allocation5 + $0x10] sm:$0xff]
    %v77 = vld [vmem:[#allocation5 + $0x18] sm:$0xff]
    %vm78 = vcmask 261120
    %v80 = vsel %vm78, %v72, 0
    %v83 = vsel %vm78, %v73, 0
    %85 = vmatprep.subr.mxu0 0.0
    %86 = vmatpush1.msra.mxu0 0.0
    %87 = vmatprep.subr.mxu0 0.0
    %88 = vmatpush1.msra.mxu0 0.0
    %89 = vmatprep.subr.mxu0 0.0
    %90 = vmatpush1.msra.mxu0 0.0
    %91 = vmatprep.subr.mxu0 0.0
    %92 = vmatpush1.msra.mxu0 0.0
    %93 = vmatprep.subr.mxu0 0.0
    %94 = vmatpush1.msra.mxu0 0.0
    %95 = vmatprep.subr.mxu0 0.0
    %96 = vmatpush1.msra.mxu0 0.0
    %97 = vmatprep.subr.mxu0 0.0
    %98 = vmatpush1.msra.mxu0 0.0
    %99 = vmatprep.subr.mxu0 0.0
    %100 = vmatpush1.msra.mxu0 0.0
    %101 = vmatprep.subr.mxu0 0.0
    %102 = vmatpush1.msra.mxu0 0.0
    %103 = vmatprep.subr.mxu0 0.0
    %104 = vmatpush1.msra.mxu0 0.0
    %105 = vmatprep.subr.mxu0 0.0
    %106 = vmatpush1.msra.mxu0 0.0
    %107 = vmatprep.subr.mxu0 0.0
    %108 = vmatpush1.msra.mxu0 0.0
    %109 = vmatprep.subr.mxu0 0.0
    %110 = vmatpush1.msra.mxu0 %v77
    %111 = vmatprep.subr.mxu0 0.0
    %112 = vmatpush1.msra.mxu0 %v76
    %113 = vmatprep.subr.mxu0 0.0
    %114 = vmatpush1.msra.mxu0 %v75
    %115 = vmatprep.subr.mxu0 0.0
    %116 = vmatpush1.msra.mxu0 %v74
    %117 = vmatprep.subr.mxu0 0.0
    %118 = vmatpush2.msra.mxu0 0.0
    %119 = vmatprep.subr.mxu0 0.0
    %120 = vmatpush2.msra.mxu0 0.0
    %121 = vmatprep.subr.mxu0 0.0
    %122 = vmatpush2.msra.mxu0 0.0
    %123 = vmatprep.subr.mxu0 0.0
    %124 = vmatpush2.msra.mxu0 0.0
    %125 = vmatprep.subr.mxu0 0.0
    %126 = vmatpush2.msra.mxu0 0.0
    %127 = vmatprep.subr.mxu0 0.0
    %128 = vmatpush2.msra.mxu0 0.0
    %129 = vmatprep.subr.mxu0 0.0
    %130 = vmatpush2.msra.mxu0 0.0
    %131 = vmatprep.subr.mxu0 0.0
    %132 = vmatpush2.msra.mxu0 0.0
    %133 = vmatprep.subr.mxu0 0.0
    %134 = vmatpush2.msra.mxu0 0.0
    %135 = vmatprep.subr.mxu0 0.0
    %136 = vmatpush2.msra.mxu0 0.0
    %137 = vmatprep.subr.mxu0 0.0
    %138 = vmatpush2.msra.mxu0 0.0
    %139 = vmatprep.subr.mxu0 0.0
    %140 = vmatpush2.msra.mxu0 0.0
    %141 = vmatprep.subr.mxu0 0.0
    %142 = vmatpush2.msra.mxu0 0.0
    %143 = vmatprep.subr.mxu0 0.0
    %144 = vmatpush2.msra.mxu0 0.0
    %145 = vmatprep.subr.mxu0 0.0
    %146 = vmatpush2.msra.mxu0 0.0
    %147 = vmatprep.subr.mxu0 0.0
    %148 = vmatpush2.msra.mxu0 0.0
    %149 = vmatprep.mubr.f32.mxu0 0.0
    %150 = vmatmul.mubr.f32.gmra.mxu0 %v80
    %v151 = vpop.f32.mrf.mxu0
    %v152 = vadd.f32 0.0, %v151
    %v153 = vpop.f32.mrf.mxu0
    %154 = vmatprep.mubr.f32.mxu0 0.0
    %155 = vmatmul.mubr.f32.gmra.mxu0 %v83
    %v156 = vpop.f32.mrf.mxu0
    %v157 = vadd.f32 0.0, %v156
    %v158 = vpop.f32.mrf.mxu0
    %159 = vdwg.mxu0
    %v160 = vadd.f32 %v72, %v152
    %v161 = vadd.f32 %v73, %v157
    %v162 = vld [vmem:[%s2] sm:$0x1]
    %v164 = vlaneseq
    %v165 = vshrl.u32 %v164, 7
    %v166 = vsub.s32 0, %v165
    %v167 = vrot.slane %v162, %v166
    %v169 = vadd.f32 %v160, %v167
    %v170 = vadd.f32 %v161, %v167
    %v171 = vsel %vm78, %v169, 0.0
    %172 = vadd.xlane.f32.xlu0 %v171
    %v173 = vpop.xlane.xlu0 %172
    %v174 = vsel %vm78, %v170, 0.0
    %175 = vadd.xlane.f32.xlu0 %v174
    %v176 = vpop.xlane.xlu0 %175
    %v177 = vrot.slane %v173, 4
    %v178 = vadd.f32 %v173, %v177
    %v179 = vrot.slane %v178, 2
    %v180 = vadd.f32 %v178, %v179
    %v181 = vrot.slane %v180, 1
    %v182 = vadd.f32 %v180, %v181
    %v183 = vrot.slane %v176, 4
    %v184 = vadd.f32 %v176, %v183
    %v185 = vrot.slane %v184, 2
    %v186 = vadd.f32 %v184, %v185
    %v187 = vrot.slane %v186, 1
    %v188 = vadd.f32 %v186, %v187
    %v189 = vmul.f32 %v182, 0.00390625
    %v190 = vmul.f32 %v188, 0.00390625
    %v191 = vsub.f32 %v169, %v189
    %v192 = vsub.f32 %v170, %v190
    %v193 = vmul.f32 %v191, %v191
    %v194 = vmul.f32 %v192, %v192
    %v195 = vsel %vm78, %v193, 0.0
    %196 = vadd.xlane.f32.xlu0 %v195
    %v197 = vpop.xlane.xlu0 %196
    %v198 = vsel %vm78, %v194, 0.0
    %199 = vadd.xlane.f32.xlu0 %v198
    %v200 = vpop.xlane.xlu0 %199
    %v201 = vrot.slane %v197, 4
    %v202 = vadd.f32 %v197, %v201
    %v203 = vrot.slane %v202, 2
    %v204 = vadd.f32 %v202, %v203
    %v205 = vrot.slane %v204, 1
    %v206 = vadd.f32 %v204, %v205
    %v207 = vrot.slane %v200, 4
    %v208 = vadd.f32 %v200, %v207
    %v209 = vrot.slane %v208, 2
    %v210 = vadd.f32 %v208, %v209
    %v211 = vrot.slane %v210, 1
    %v212 = vadd.f32 %v210, %v211
    %v213 = vmul.f32 %v206, 0.00390625
    %v214 = vmul.f32 %v212, 0.00390625
    %v215 = vadd.f32 %v213, 1e-05
    %v216 = vadd.f32 %v214, 1e-05
    %v217 = vrsqrt.pop %v215
    %v218 = vrsqrt.pop %v216
    %v219 = vld [vmem:[#allocation7] sm:$0xff]
    %v220 = vld [vmem:[#allocation8] sm:$0xff]
    %v221 = vmul.f32 %v191, %v217
    %v222 = vmul.f32 %v192, %v218
    %v223 = vmul.f32 %v221, %v219
    %v224 = vmul.f32 %v222, %v219
    %v225 = vadd.f32 %v223, %v220
    %v226 = vadd.f32 %v224, %v220
    %227 = vst.msk [vmem:[#allocation10] sm:$0xff] %vm78, %v225
    %228 = vst.msk [vmem:[#allocation10 + $0x8] sm:$0xff] %vm78, %v226
    // Predicated region
    $region38: #{tpu_custom_call.1} parent=1 // pred_check
      _
    $region39: #{tpu_custom_call.1} parent=1 // pred_check_branch
      %230 = sbr.rel (0) target = $region41
    $region40: #{tpu_custom_call.1} parent=1 // pred_region
      %s232 = ssub.s32 256, 256
      %233 = vsyncadd [#allocation4], %s232
      %s234 = sshll.u32 [#allocation10], 4
      %s235 = int_to_ptr.vmem [resolvable:$true] %s234
      %240 = dma.vmem_to_hbm [thread:$0]  %s235, 256, %s5, [#allocation4], 128, 128, 8
    $region41: #{tpu_custom_call.1} parent=1 // pred_fallthru
      _
    // Predicated region
    $region42: #{tpu_custom_call.1} parent=1 // pred_check
      _
    $region43: #{tpu_custom_call.1} parent=1 // pred_check_branch
      %242 = sbr.rel (0) target = $region45
    $region44: #{tpu_custom_call.1} parent=1 // pred_region
      %243 = dma.done [#allocation4], 256
    $region45: #{tpu_custom_call.1} parent=1 // pred_fallthru
      _
    %244 = vsyncpa [#allocation3], 1
    %245 = vsyncpa [#allocation6], 1
    %246 = vsyncpa [#allocation9], 1
    %247 = vsyncpa [#allocation4], 1

// kernel: tpu_custom_call.1
$region0: #{tpu_custom_call.1}
  #allocation0 [shape = 'u32[]', space=smem, size = 0x4, offset = 0x4, fixed_abs, tag = 'smem constant byte address 0x4 - core index']
  #allocation1 [shape = 'u32[144,128]{1,0:T(1,128)}', space=vmem, size = 0x12000, scoped, tag = 'internal scratch']
  %s0 = inlined_call_operand.hbm [shape: f32[2,8,32], index: 0, kind: input, shape index: {}]
  %s1 = inlined_call_operand.hbm [shape: f32[32,32], index: 1, kind: input, shape index: {}]
  %s2 = inlined_call_operand.vmem [shape: f32[1,32], index: 2, kind: input, shape index: {}]
  %s3 = inlined_call_operand.hbm [shape: f32[8,32], index: 3, kind: input, shape index: {}]
  %s4 = inlined_call_operand.hbm [shape: f32[8,32], index: 4, kind: input, shape index: {}]
  %s5 = inlined_call_operand.hbm [shape: f32[2,8,32], index: 5, kind: output, shape index: {}]
  %s6 = sld [smem:[#allocation0]]
  $region46: #{tpu_custom_call.1} parent=0
    _
  %s8 = ssub.s32 1, %s6
  %s9 = scalar_select 0, %s8, %s6
  $region1: #{tpu_custom_call.1} parent=0
    #allocation2 [shape = 'u8[8192]{0}', space=vmem, size = 0x2000, scoped, tag = 'input window, operand 0, single buffered']
    #allocation3 [shape = 's32[1]{0}', space=sflag, size = 0x4, scoped, tag = 'scoped memory for tpu_custom_call.1']
    #allocation4 [shape = 's32[1]{0}', space=sflag, size = 0x4, scoped, tag = 'scoped memory for tpu_custom_call.1']
    #allocation5 [shape = 'u8[16384]{0}', space=vmem, size = 0x4000, scoped, tag = 'input window, operand 1, single buffered']
    #allocation6 [shape = 's32[1]{0}', space=sflag, size = 0x4, scoped, tag = 'scoped memory for tpu_custom_call.1']
    #allocation7 [shape = 'u8[4096]{0}', space=vmem, size = 0x1000, scoped, tag = 'input window, operand 3, single buffered']
    #allocation8 [shape = 'u8[4096]{0}', space=vmem, size = 0x1000, scoped, tag = 'input window, operand 4, single buffered']
    #allocation9 [shape = 's32[1]{0}', space=sflag, size = 0x4, scoped, tag = 'scoped memory for tpu_custom_call.1']
    #allocation10 [shape = 'u8[8192]{0}', space=vmem, size = 0x2000, scoped, tag = 'output window, operand 0, single buffered']
    %10 = vsyncpa [#allocation3], 0
    %11 = vsyncpa [#allocation6], 0
    %12 = vsyncpa [#allocation9], 0
    %13 = vsyncpa [#allocation4], 0
    // Predicated region
    $region2: #{tpu_custom_call.1} parent=1 // pred_check
      _
    $region3: #{tpu_custom_call.1} parent=1 // pred_check_branch
      %15 = sbr.rel (0) target = $region5
    $region4: #{tpu_custom_call.1} parent=1 // pred_region
      %s17 = ssub.s32 256, 256
      %18 = vsyncadd [#allocation3], %s17
      %s19 = sshll.u32 [#allocation2], 4
      %s20 = int_to_ptr.vmem [resolvable:$true] %s19
      %25 = dma.hbm_to_vmem [thread:$0]  %s0, 256, %s20, [#allocation3], 128, 128, 8
    $region5: #{tpu_custom_call.1} parent=1 // pred_fallthru
      _
    // Predicated region
    $region6: #{tpu_custom_call.1} parent=1 // pred_check
      _
    $region7: #{tpu_custom_call.1} parent=1 // pred_check_branch
      %27 = sbr.rel (0) target = $region9
    $region8: #{tpu_custom_call.1} parent=1 // pred_region
      %s29 = ssub.s32 512, 512
      %30 = vsyncadd [#allocation6], %s29
      %s31 = sshll.u32 [#allocation5], 4
      %s32 = int_to_ptr.vmem [resolvable:$true] %s31
      %37 = dma.hbm_to_vmem [thread:$0]  %s1, 512, %s32, [#allocation6], 128, 128, 8
    $region9: #{tpu_custom_call.1} parent=1 // pred_fallthru
      _
    // Predicated region
    $region10: #{tpu_custom_call.1} parent=1 // pred_check
      _
    $region11: #{tpu_custom_call.1} parent=1 // pred_check_branch
      %39 = sbr.rel (0) target = $region13
    $region12: #{tpu_custom_call.1} parent=1 // pred_region
      _
    $region13: #{tpu_custom_call.1} parent=1 // pred_fallthru
      _
    // Predicated region
    $region14: #{tpu_custom_call.1} parent=1 // pred_check
      _
    $region15: #{tpu_custom_call.1} parent=1 // pred_check_branch
      %41 = sbr.rel (0) target = $region17
    $region16: #{tpu_custom_call.1} parent=1 // pred_region
      %s43 = ssub.s32 128, 128
      %44 = vsyncadd [#allocation6], %s43
      %s46 = sshll.u32 [#allocation7], 4
      %s47 = int_to_ptr.vmem [resolvable:$true] %s46
      %49 = dma.hbm_to_vmem [thread:$0]  %s3, 128, %s47, [#allocation6]
    $region17: #{tpu_custom_call.1} parent=1 // pred_fallthru
      _
    // Predicated region
    $region18: #{tpu_custom_call.1} parent=1 // pred_check
      _
    $region19: #{tpu_custom_call.1} parent=1 // pred_check_branch
      %51 = sbr.rel (0) target = $region21
    $region20: #{tpu_custom_call.1} parent=1 // pred_region
      %s53 = ssub.s32 128, 128
      %54 = vsyncadd [#allocation9], %s53
      %s56 = sshll.u32 [#allocation8], 4
      %s57 = int_to_ptr.vmem [resolvable:$true] %s56
      %59 = dma.hbm_to_vmem [thread:$0]  %s4, 128, %s57, [#allocation9]
    $region21: #{tpu_custom_call.1} parent=1 // pred_fallthru
      _
    // Predicated region
    $region22: #{tpu_custom_call.1} parent=1 // pred_check
      _
    $region23: #{tpu_custom_call.1} parent=1 // pred_check_branch
      %61 = sbr.rel (0) target = $region25
    $region24: #{tpu_custom_call.1} parent=1 // pred_region
      %62 = dma.done [#allocation3], 256
    $region25: #{tpu_custom_call.1} parent=1 // pred_fallthru
      _
    // Predicated region
    $region26: #{tpu_custom_call.1} parent=1 // pred_check
      _
    $region27: #{tpu_custom_call.1} parent=1 // pred_check_branch
      %64 = sbr.rel (0) target = $region29
    $region28: #{tpu_custom_call.1} parent=1 // pred_region
      %65 = dma.done [#allocation6], 512
    $region29: #{tpu_custom_call.1} parent=1 // pred_fallthru
      _
    // Predicated region
    $region30: #{tpu_custom_call.1} parent=1 // pred_check
      _
    $region31: #{tpu_custom_call.1} parent=1 // pred_check_branch
      %67 = sbr.rel (0) target = $region33
    $region32: #{tpu_custom_call.1} parent=1 // pred_region
      %68 = dma.done [#allocation6], 128
    $region33: #{tpu_custom_call.1} parent=1 // pred_fallthru
      _
    // Predicated region
    $region34: #{tpu_custom_call.1} parent=1 // pred_check
      _
    $region35: #{tpu_custom_call.1} parent=1 // pred_check_branch
      %70 = sbr.rel (0) target = $region37
    $region36: #{tpu_custom_call.1} parent=1 // pred_region
      %71 = dma.done [#allocation9], 128
    $region37: #{tpu_custom_call.1} parent=1 // pred_fallthru
      _
    %v72 = vld [vmem:[#allocation2] sm:$0xff]
    %v73 = vld [vmem:[#allocation2 + $0x8] sm:$0xff]
    %v74 = vld [vmem:[#allocation5] sm:$0xff]
    %v75 = vld [vmem:[#allocation5 + $0x8] sm:$0xff]
    %v76 = vld [vmem:[#allocation5 + $0x10] sm:$0xff]
    %v77 = vld [vmem:[#allocation5 + $0x18] sm:$0xff]
    %vm78 = vcmask 261120
    %v80 = vsel %vm78, %v72, 0
    %v83 = vsel %vm78, %v73, 0
    %85 = vmatprep.subr.mxu0 0.0
    %86 = vmatpush1.msra.mxu0 0.0
    %87 = vmatprep.subr.mxu0 0.0
    %88 = vmatpush1.msra.mxu0 0.0
    %89 = vmatprep.subr.mxu0 0.0
    %90 = vmatpush1.msra.mxu0 0.0
    %91 = vmatprep.subr.mxu0 0.0
    %92 = vmatpush1.msra.mxu0 0.0
    %93 = vmatprep.subr.mxu0 0.0
    %94 = vmatpush1.msra.mxu0 0.0
    %95 = vmatprep.subr.mxu0 0.0
    %96 = vmatpush1.msra.mxu0 0.0
    %97 = vmatprep.subr.mxu0 0.0
    %98 = vmatpush1.msra.mxu0 0.0
    %99 = vmatprep.subr.mxu0 0.0
    %100 = vmatpush1.msra.mxu0 0.0
    %101 = vmatprep.subr.mxu0 0.0
    %102 = vmatpush1.msra.mxu0 0.0
    %103 = vmatprep.subr.mxu0 0.0
    %104 = vmatpush1.msra.mxu0 0.0
    %105 = vmatprep.subr.mxu0 0.0
    %106 = vmatpush1.msra.mxu0 0.0
    %107 = vmatprep.subr.mxu0 0.0
    %108 = vmatpush1.msra.mxu0 0.0
    %109 = vmatprep.subr.mxu0 0.0
    %110 = vmatpush1.msra.mxu0 %v77
    %111 = vmatprep.subr.mxu0 0.0
    %112 = vmatpush1.msra.mxu0 %v76
    %113 = vmatprep.subr.mxu0 0.0
    %114 = vmatpush1.msra.mxu0 %v75
    %115 = vmatprep.subr.mxu0 0.0
    %116 = vmatpush1.msra.mxu0 %v74
    %117 = vmatprep.subr.mxu0 0.0
    %118 = vmatpush2.msra.mxu0 0.0
    %119 = vmatprep.subr.mxu0 0.0
    %120 = vmatpush2.msra.mxu0 0.0
    %121 = vmatprep.subr.mxu0 0.0
    %122 = vmatpush2.msra.mxu0 0.0
    %123 = vmatprep.subr.mxu0 0.0
    %124 = vmatpush2.msra.mxu0 0.0
    %125 = vmatprep.subr.mxu0 0.0
    %126 = vmatpush2.msra.mxu0 0.0
    %127 = vmatprep.subr.mxu0 0.0
    %128 = vmatpush2.msra.mxu0 0.0
    %129 = vmatprep.subr.mxu0 0.0
    %130 = vmatpush2.msra.mxu0 0.0
    %131 = vmatprep.subr.mxu0 0.0
    %132 = vmatpush2.msra.mxu0 0.0
    %133 = vmatprep.subr.mxu0 0.0
    %134 = vmatpush2.msra.mxu0 0.0
    %135 = vmatprep.subr.mxu0 0.0
    %136 = vmatpush2.msra.mxu0 0.0
    %137 = vmatprep.subr.mxu0 0.0
    %138 = vmatpush2.msra.mxu0 0.0
    %139 = vmatprep.subr.mxu0 0.0
    %140 = vmatpush2.msra.mxu0 0.0
    %141 = vmatprep.subr.mxu0 0.0
    %142 = vmatpush2.msra.mxu0 0.0
    %143 = vmatprep.subr.mxu0 0.0
    %144 = vmatpush2.msra.mxu0 0.0
    %145 = vmatprep.subr.mxu0 0.0
    %146 = vmatpush2.msra.mxu0 0.0
    %147 = vmatprep.subr.mxu0 0.0
    %148 = vmatpush2.msra.mxu0 0.0
    %149 = vmatprep.mubr.f32.mxu0 0.0
    %150 = vmatmul.mubr.f32.gmra.mxu0 %v80
    %v151 = vpop.f32.mrf.mxu0
    %v152 = vadd.f32 0.0, %v151
    %v153 = vpop.f32.mrf.mxu0
    %154 = vmatprep.mubr.f32.mxu0 0.0
    %155 = vmatmul.mubr.f32.gmra.mxu0 %v83
    %v156 = vpop.f32.mrf.mxu0
    %v157 = vadd.f32 0.0, %v156
    %v158 = vpop.f32.mrf.mxu0
    %159 = vdwg.mxu0
    %v160 = vadd.f32 %v72, %v152
    %v161 = vadd.f32 %v73, %v157
    %v162 = vld [vmem:[%s2] sm:$0x1]
    %v164 = vlaneseq
    %v165 = vshrl.u32 %v164, 7
    %v166 = vsub.s32 0, %v165
    %v167 = vrot.slane %v162, %v166
    %v169 = vadd.f32 %v160, %v167
    %v170 = vadd.f32 %v161, %v167
    %v171 = vsel %vm78, %v169, 0.0
    %172 = vadd.xlane.f32.xlu0 %v171
    %v173 = vpop.xlane.xlu0 %172
    %v174 = vsel %vm78, %v170, 0.0
    %175 = vadd.xlane.f32.xlu0 %v174
    %v176 = vpop.xlane.xlu0 %175
    %v177 = vrot.slane %v173, 4
    %v178 = vadd.f32 %v173, %v177
    %v179 = vrot.slane %v178, 2
    %v180 = vadd.f32 %v178, %v179
    %v181 = vrot.slane %v180, 1
    %v182 = vadd.f32 %v180, %v181
    %v183 = vrot.slane %v176, 4
    %v184 = vadd.f32 %v176, %v183
    %v185 = vrot.slane %v184, 2
    %v186 = vadd.f32 %v184, %v185
    %v187 = vrot.slane %v186, 1
    %v188 = vadd.f32 %v186, %v187
    %v189 = vmul.f32 %v182, 0.00390625
    %v190 = vmul.f32 %v188, 0.00390625
    %v191 = vsub.f32 %v169, %v189
    %v192 = vsub.f32 %v170, %v190
    %v193 = vmul.f32 %v191, %v191
    %v194 = vmul.f32 %v192, %v192
    %v195 = vsel %vm78, %v193, 0.0
    %196 = vadd.xlane.f32.xlu0 %v195
    %v197 = vpop.xlane.xlu0 %196
    %v198 = vsel %vm78, %v194, 0.0
    %199 = vadd.xlane.f32.xlu0 %v198
    %v200 = vpop.xlane.xlu0 %199
    %v201 = vrot.slane %v197, 4
    %v202 = vadd.f32 %v197, %v201
    %v203 = vrot.slane %v202, 2
    %v204 = vadd.f32 %v202, %v203
    %v205 = vrot.slane %v204, 1
    %v206 = vadd.f32 %v204, %v205
    %v207 = vrot.slane %v200, 4
    %v208 = vadd.f32 %v200, %v207
    %v209 = vrot.slane %v208, 2
    %v210 = vadd.f32 %v208, %v209
    %v211 = vrot.slane %v210, 1
    %v212 = vadd.f32 %v210, %v211
    %v213 = vmul.f32 %v206, 0.00390625
    %v214 = vmul.f32 %v212, 0.00390625
    %v215 = vadd.f32 %v213, 1e-05
    %v216 = vadd.f32 %v214, 1e-05
    %v217 = vrsqrt.pop %v215
    %v218 = vrsqrt.pop %v216
    %v219 = vld [vmem:[#allocation7] sm:$0xff]
    %v220 = vld [vmem:[#allocation8] sm:$0xff]
    %v221 = vmul.f32 %v191, %v217
    %v222 = vmul.f32 %v192, %v218
    %v223 = vmul.f32 %v221, %v219
    %v224 = vmul.f32 %v222, %v219
    %v225 = vadd.f32 %v223, %v220
    %v226 = vadd.f32 %v224, %v220
    %227 = vst.msk [vmem:[#allocation10] sm:$0xff] %vm78, %v225
    %228 = vst.msk [vmem:[#allocation10 + $0x8] sm:$0xff] %vm78, %v226
    // Predicated region
    $region38: #{tpu_custom_call.1} parent=1 // pred_check
      _
    $region39: #{tpu_custom_call.1} parent=1 // pred_check_branch
      %230 = sbr.rel (0) target = $region41
    $region40: #{tpu_custom_call.1} parent=1 // pred_region
      %s232 = ssub.s32 256, 256
      %233 = vsyncadd [#allocation4], %s232
      %s234 = sshll.u32 [#allocation10], 4
      %s235 = int_to_ptr.vmem [resolvable:$true] %s234
      %240 = dma.vmem_to_hbm [thread:$0]  %s235, 256, %s5, [#allocation4], 128, 128, 8
    $region41: #{tpu_custom_call.1} parent=1 // pred_fallthru
      _
    // Predicated region
    $region42: #{tpu_custom_call.1} parent=1 // pred_check
      _
    $region43: #{tpu_custom_call.1} parent=1 // pred_check_branch
      %242 = sbr.rel (0) target = $region45
    $region44: #{tpu_custom_call.1} parent=1 // pred_region
      %243 = dma.done [#allocation4], 256
    $region45: #{tpu_custom_call.1} parent=1 // pred_fallthru
      _
    %244 = vsyncpa [#allocation3], 1
    %245 = vsyncpa [#allocation6], 1
    %246 = vsyncpa [#allocation9], 1
    %247 = vsyncpa [#allocation4], 1

</llo_original>
